<compile_context>
chip_gen: v6e
topology: v6e:2x2x1
jax: 0.10.0
libtpu: 0.0.40
codegen_flags: <defaults>
</compile_context>

<pallas_src>
import jax
import jax.numpy as jnp
from jax import lax
from jax.experimental import pallas as pl
from jax.experimental.pallas import tpu as pltpu


def embedding_net_kernel(x_ref, w1_ref, b1_ref, w2_ref, b2_ref,
                         emb_ref, outz_ref):
    # In-kernel bf16 cast of the f32 x tile (VPU work, hidden under DMA slack).
    x = x_ref[...].astype(jnp.bfloat16)

    # fc1 + ReLU: bf16 MXU inputs, f32 accumulation; bias add / ReLU in f32.
    h = jnp.dot(x, w1_ref[...], preferred_element_type=jnp.float32)
    h = jnp.maximum(h + b1_ref[...], 0.0)            # nn.ReLU
    emb_ref[...] = h.astype(emb_ref.dtype)

    # fc2: consume in-register h (no HBM read-back), f32 accumulation.
    z = jnp.dot(h.astype(jnp.bfloat16), w2_ref[...],
                preferred_element_type=jnp.float32)
    z = z + b2_ref[...]

    # F.normalize(z, dim=1): z / max(||z||, 1e-12)
    # == z * rsqrt(max(||z||^2, 1e-24))  (rsqrt -> EUP slot; NaN-safe even for
    # garbage rows in a masked partial batch tile).
    sumsq = jnp.sum(z * z, axis=1, keepdims=True)
    inv = lax.rsqrt(jnp.maximum(sumsq, 1e-24))
    outz_ref[...] = (z * inv).astype(outz_ref.dtype)


def _round_up(x, m):
    return ((x + m - 1) // m) * m


def _choose_tm(B, tm_max=1024):
    """Batch tile: 16-row (bf16 sublane) granularity; aim for >=2 grid steps
    once B is non-trivial (v7x megacore); round to 256 when large; cap at
    tm_max so the double-buffered working set stays well under v5e's 16 MiB
    scoped-VMEM default."""
    if B <= 16:
        return _round_up(max(B, 8), 8)
    tm = _round_up(pl.cdiv(B, 2), 16)
    if tm >= 256:
        tm = _round_up(tm, 256)
    return min(tm, tm_max)


def embedding_net_forward(features, w1_t, b1, w2_t, b2, *, tm=None):
    """features: [B, resSize] (f32); w1_t: [resSize, embedSize];
    w2_t: [embedSize, outzSize] (PyTorch Linear weights transposed to [in, out])."""
    B, res_size = features.shape
    embed_size = w1_t.shape[1]
    outz_size = w2_t.shape[1]

    if tm is None:
        tm = _choose_tm(B)
    grid = (pl.cdiv(B, tm),)   # partial last block is masked by Pallas (no pad/slice)

    # Weights are tiny and VMEM-resident (constant index map); bf16 halves
    # their one-time DMA. Biases stay f32 rows.
    w1_bf = w1_t.astype(jnp.bfloat16)
    w2_bf = w2_t.astype(jnp.bfloat16)
    b1_row = b1.astype(jnp.float32).reshape(1, embed_size)
    b2_row = b2.astype(jnp.float32).reshape(1, outz_size)

    # Advisory cost estimate (memory-bound custom call; helps XLA overlap it).
    flops = 2 * B * (res_size * embed_size + embed_size * outz_size)
    bytes_accessed = (
        B * res_size * features.dtype.itemsize              # x
        + B * (embed_size + outz_size) * 4                  # emb + out_z (f32)
        + (res_size * embed_size + embed_size * outz_size) * 2  # bf16 weights
        + (embed_size + outz_size) * 4)                      # biases

    emb, out_z = pl.pallas_call(
        embedding_net_kernel,
        out_shape=(
            jax.ShapeDtypeStruct((B, embed_size), jnp.float32),
            jax.ShapeDtypeStruct((B, outz_size), jnp.float32),
        ),
        grid=grid,
        in_specs=[
            pl.BlockSpec((tm, res_size), lambda i: (i, 0)),           # x tile (f32)
            pl.BlockSpec((res_size, embed_size), lambda i: (0, 0)),   # w1 resident
            pl.BlockSpec((1, embed_size), lambda i: (0, 0)),          # b1 resident
            pl.BlockSpec((embed_size, outz_size), lambda i: (0, 0)),  # w2 resident
            pl.BlockSpec((1, outz_size), lambda i: (0, 0)),           # b2 resident
        ],
        out_specs=(
            pl.BlockSpec((tm, embed_size), lambda i: (i, 0)),
            pl.BlockSpec((tm, outz_size), lambda i: (i, 0)),
        ),
        compiler_params=pltpu.CompilerParams(
            dimension_semantics=("parallel",),
        ),
        cost_estimate=pl.CostEstimate(
            flops=flops, transcendentals=B, bytes_accessed=bytes_accessed),
    )(features, w1_bf, b1_row, w2_bf, b2_row)

    return emb, out_z


def init_params(key, res_size, embed_size, outz_size, dtype=jnp.float32):
    # weights_init: Linear weights ~ N(0, 0.02), biases = 0
    k1, k2 = jax.random.split(key)
    w1 = jax.random.normal(k1, (embed_size, res_size), dtype) * 0.02   # PyTorch [out, in]
    w2 = jax.random.normal(k2, (outz_size, embed_size), dtype) * 0.02
    b1 = jnp.zeros((embed_size,), dtype)
    b2 = jnp.zeros((outz_size,), dtype)
    return w1, b1, w2, b2


def _ref_f32(features, w1, b1, w2, b2):
    """Plain-JAX, full-f32 PyTorch-forward semantics."""
    h = jnp.maximum(features @ w1.T + b1, 0.0)
    z = h @ w2.T + b2
    z = z / jnp.maximum(jnp.sqrt(jnp.sum(z * z, axis=1, keepdims=True)), 1e-12)
    return h, z


if __name__ == "__main__":
    # Shapes consistent with the module: opt.resSize=256, embedSize=128, outzSize=128.
    RES, EMB, OUTZ = 256, 128, 128
    key = jax.random.PRNGKey(0)
    kx, kp, kx2 = jax.random.split(key, 3)
    w1, b1, w2, b2 = init_params(kp, RES, EMB, OUTZ)

    # --- case 1: tiny batch (single grid step) -----------------------------
    B = 8
    features = jax.random.normal(kx, (B, RES), jnp.float32)
    emb, out_z = embedding_net_forward(features, w1.T, b1, w2.T, b2)
    jax.block_until_ready((emb, out_z))
    assert emb.shape == (B, EMB) and out_z.shape == (B, OUTZ)

    # Tight check: same bf16-input / f32-accumulation recipe in plain JAX.
    x_bf = features.astype(jnp.bfloat16)
    w1_bf, w2_bf = w1.T.astype(jnp.bfloat16), w2.T.astype(jnp.bfloat16)
    h_ref = jnp.maximum(
        jnp.dot(x_bf, w1_bf, preferred_element_type=jnp.float32) + b1, 0.0)
    z_ref = jnp.dot(h_ref.astype(jnp.bfloat16), w2_bf,
                    preferred_element_type=jnp.float32) + b2
    z_ref = z_ref * lax.rsqrt(
        jnp.maximum(jnp.sum(z_ref * z_ref, axis=1, keepdims=True), 1e-24))
    assert jnp.allclose(emb, h_ref, atol=5e-3, rtol=5e-3)
    assert jnp.allclose(out_z, z_ref, atol=5e-3, rtol=5e-3)

    # Loose check: full-f32 PyTorch semantics (MXU inputs are bf16).
    h32, z32 = _ref_f32(features, w1, b1, w2, b2)
    assert jnp.allclose(emb, h32, atol=3e-2, rtol=3e-2)
    assert jnp.allclose(out_z, z32, atol=3e-2, rtol=3e-2)

    # --- case 2: batch not a multiple of the tile (masked partial block) ---
    # B2=200 -> tm=112, grid=2, second block covers only 88 valid rows.
    B2 = 200
    features2 = jax.random.normal(kx2, (B2, RES), jnp.float32)
    emb2, out_z2 = embedding_net_forward(features2, w1.T, b1, w2.T, b2)
    jax.block_until_ready((emb2, out_z2))
    assert emb2.shape == (B2, EMB) and out_z2.shape == (B2, OUTZ)

    h32_2, z32_2 = _ref_f32(features2, w1, b1, w2, b2)
    assert jnp.allclose(emb2, h32_2, atol=3e-2, rtol=3e-2)
    assert jnp.allclose(out_z2, z32_2, atol=3e-2, rtol=3e-2)
    assert not jnp.any(jnp.isnan(out_z2))

    print("KERNEL_OK")
</pallas_src>

<mosaic_0001>
module attributes {stable_mosaic.version = 11 : i64} {
  func.func @embedding_net_kernel(%arg0: i32, %arg1: memref<8x256xf32, #tpu.memory_space<vmem>>, %arg2: memref<256x128xbf16, #tpu.memory_space<vmem>>, %arg3: memref<1x128xf32, #tpu.memory_space<vmem>>, %arg4: memref<128x128xbf16, #tpu.memory_space<vmem>>, %arg5: memref<1x128xf32, #tpu.memory_space<vmem>>, %arg6: memref<8x128xf32, #tpu.memory_space<vmem>>, %arg7: memref<8x128xf32, #tpu.memory_space<vmem>>) attributes {dimension_semantics = [#tpu.dimension_semantics<parallel>], iteration_bounds = array<i64: 1>, scalar_prefetch = 0 : i64, scratch_operands = 0 : i64, tpu.core_type = #tpu.core_type<tc>, window_params = [{transform_indices = @transform_0, window_bounds = array<i64: 8, 256>}, {pipeline_mode = #tpu.pipeline_mode<synchronous>, transform_indices = @transform_1, window_bounds = array<i64: 256, 128>}, {pipeline_mode = #tpu.pipeline_mode<synchronous>, transform_indices = @transform_2, window_bounds = array<i64: 1, 128>}, {pipeline_mode = #tpu.pipeline_mode<synchronous>, transform_indices = @transform_3, window_bounds = array<i64: 128, 128>}, {pipeline_mode = #tpu.pipeline_mode<synchronous>, transform_indices = @transform_4, window_bounds = array<i64: 1, 128>}, {transform_indices = @transform_5, window_bounds = array<i64: 8, 128>}, {transform_indices = @transform_6, window_bounds = array<i64: 8, 128>}]} {
    %c0 = arith.constant 0 : index
    %c0_0 = arith.constant 0 : index
    %0 = vector.load %arg1[%c0, %c0_0] : memref<8x256xf32, #tpu.memory_space<vmem>>, vector<8x256xf32>
    %1 = arith.truncf %0 : vector<8x256xf32> to vector<8x256xbf16>
    %c0_1 = arith.constant 0 : index
    %c0_2 = arith.constant 0 : index
    %2 = vector.load %arg2[%c0_1, %c0_2] : memref<256x128xbf16, #tpu.memory_space<vmem>>, vector<256x128xbf16>
    %cst = arith.constant dense<0.000000e+00> : vector<8x128xf32>
    %3 = tpu.matmul %1, %2, %cst {dimension_numbers = #tpu.dot_dimension_numbers<[1], [0], [0], [1], [0, 0, 1, 1], [], []>} : vector<8x256xbf16>, vector<256x128xbf16>, vector<8x128xf32> -> vector<8x128xf32>
    %c0_3 = arith.constant 0 : index
    %c0_4 = arith.constant 0 : index
    %4 = vector.load %arg3[%c0_3, %c0_4] : memref<1x128xf32, #tpu.memory_space<vmem>>, vector<1x128xf32>
    %5 = vector.broadcast %4 : vector<1x128xf32> to vector<8x128xf32>
    %6 = arith.addf %3, %5 : vector<8x128xf32>
    %cst_5 = arith.constant 0.000000e+00 : f32
    %7 = vector.broadcast %cst_5 : f32 to vector<8x128xf32>
    %8 = arith.maximumf %6, %7 : vector<8x128xf32>
    %c0_6 = arith.constant 0 : index
    %c0_7 = arith.constant 0 : index
    %9 = vector.load %arg6[%c0_6, %c0_7] : memref<8x128xf32, #tpu.memory_space<vmem>>, vector<8x128xf32>
    tpu.vector_store %arg6[%c0_6, %c0_7], %8 {strides = array<i32>} : memref<8x128xf32, #tpu.memory_space<vmem>>, vector<8x128xf32>,
    %10 = arith.truncf %8 : vector<8x128xf32> to vector<8x128xbf16>
    %c0_8 = arith.constant 0 : index
    %c0_9 = arith.constant 0 : index
    %11 = vector.load %arg4[%c0_8, %c0_9] : memref<128x128xbf16, #tpu.memory_space<vmem>>, vector<128x128xbf16>
    %cst_10 = arith.constant dense<0.000000e+00> : vector<8x128xf32>
    %12 = tpu.matmul %10, %11, %cst_10 {dimension_numbers = #tpu.dot_dimension_numbers<[1], [0], [0], [1], [0, 0, 1, 1], [], []>} : vector<8x128xbf16>, vector<128x128xbf16>, vector<8x128xf32> -> vector<8x128xf32>
    %c0_11 = arith.constant 0 : index
    %c0_12 = arith.constant 0 : index
    %13 = vector.load %arg5[%c0_11, %c0_12] : memref<1x128xf32, #tpu.memory_space<vmem>>, vector<1x128xf32>
    %14 = vector.broadcast %13 : vector<1x128xf32> to vector<8x128xf32>
    %15 = arith.addf %12, %14 : vector<8x128xf32>
    %16 = arith.mulf %15, %15 : vector<8x128xf32>
    %cst_13 = arith.constant dense<0.000000e+00> : vector<8xf32>
    %17 = vector.multi_reduction <add>, %16, %cst_13 [1] : vector<8x128xf32> to vector<8xf32>
    %18 = vector.shape_cast %17 : vector<8xf32> to vector<8x1xf32>
    %cst_14 = arith.constant 1.000000e-24 : f32
    %19 = vector.broadcast %cst_14 : f32 to vector<8x1xf32>
    %20 = arith.maximumf %18, %19 : vector<8x1xf32>
    %21 = math.rsqrt %20 : vector<8x1xf32>
    %22 = vector.broadcast %21 : vector<8x1xf32> to vector<8x128xf32>
    %23 = arith.mulf %15, %22 : vector<8x128xf32>
    %c0_15 = arith.constant 0 : index
    %c0_16 = arith.constant 0 : index
    %24 = vector.load %arg7[%c0_15, %c0_16] : memref<8x128xf32, #tpu.memory_space<vmem>>, vector<8x128xf32>
    tpu.vector_store %arg7[%c0_15, %c0_16], %23 {strides = array<i32>} : memref<8x128xf32, #tpu.memory_space<vmem>>, vector<8x128xf32>,
    return
  }
  func.func @transform_0(%arg0: i32) -> (i32, i32) {
    %c0_i32 = arith.constant 0 : i32
    %c0_i32_0 = arith.constant 0 : i32
    return %arg0, %c0_i32 : i32, i32
  }
  func.func @transform_1(%arg0: i32) -> (i32, i32) {
    %c0_i32 = arith.constant 0 : i32
    %c0_i32_0 = arith.constant 0 : i32
    %c0_i32_1 = arith.constant 0 : i32
    return %c0_i32, %c0_i32_0 : i32, i32
  }
  func.func @transform_2(%arg0: i32) -> (i32, i32) {
    %c0_i32 = arith.constant 0 : i32
    %c0_i32_0 = arith.constant 0 : i32
    %c0_i32_1 = arith.constant 0 : i32
    return %c0_i32, %c0_i32_0 : i32, i32
  }
  func.func @transform_3(%arg0: i32) -> (i32, i32) {
    %c0_i32 = arith.constant 0 : i32
    %c0_i32_0 = arith.constant 0 : i32
    %c0_i32_1 = arith.constant 0 : i32
    return %c0_i32, %c0_i32_0 : i32, i32
  }
  func.func @transform_4(%arg0: i32) -> (i32, i32) {
    %c0_i32 = arith.constant 0 : i32
    %c0_i32_0 = arith.constant 0 : i32
    %c0_i32_1 = arith.constant 0 : i32
    return %c0_i32, %c0_i32_0 : i32, i32
  }
  func.func @transform_5(%arg0: i32) -> (i32, i32) {
    %c0_i32 = arith.constant 0 : i32
    %c0_i32_0 = arith.constant 0 : i32
    return %arg0, %c0_i32 : i32, i32
  }
  func.func @transform_6(%arg0: i32) -> (i32, i32) {
    %c0_i32 = arith.constant 0 : i32
    %c0_i32_0 = arith.constant 0 : i32
    return %arg0, %c0_i32 : i32, i32
  }
}

</mosaic_0001>

<llo_original>
// kernel: tpu_custom_call.1
$region0: #{tpu_custom_call.1}
  #allocation0 [shape = 'u32[]', space=smem, size = 0x4, offset = 0x4, fixed_abs, tag = 'smem constant byte address 0x4 - core index']
  #allocation1 [shape = 'u32[144,128]{1,0:T(1,128)}', space=vmem, size = 0x12000, scoped, tag = 'internal scratch']
  %s0 = inlined_call_operand.hbm [shape: f32[8,256], index: 0, kind: input, shape index: {}]
  %s1 = inlined_call_operand.hbm [shape: bf16[256,128], index: 1, kind: input, shape index: {}]
  %s2 = inlined_call_operand.vmem [shape: f32[1,128], index: 2, kind: input, shape index: {}]
  %s3 = inlined_call_operand.hbm [shape: bf16[128,128], index: 3, kind: input, shape index: {}]
  %s4 = inlined_call_operand.vmem [shape: f32[1,128], index: 4, kind: input, shape index: {}]
  %s5 = inlined_call_operand.hbm [shape: f32[8,128], index: 5, kind: output, shape index: {0}]
  %s6 = inlined_call_operand.hbm [shape: f32[8,128], index: 6, kind: output, shape index: {1}]
  %7 = xla_tuple %s5, %s6
  %s8 = sld [smem:[#allocation0]]
  $region50: #{tpu_custom_call.1} parent=0
    _
  %s10 = ssub.s32 1, %s8
  %s11 = scalar_select 0, %s10, %s8
  $region1: #{tpu_custom_call.1} parent=0
    #allocation2 [shape = 'u8[8192]{0}', space=vmem, size = 0x2000, scoped, tag = 'input window, operand 0, single buffered']
    #allocation3 [shape = 's32[1]{0}', space=sflag, size = 0x4, scoped, tag = 'scoped memory for tpu_custom_call.1']
    #allocation4 [shape = 's32[1]{0}', space=sflag, size = 0x4, scoped, tag = 'scoped memory for tpu_custom_call.1']
    #allocation5 [shape = 'u8[65536]{0}', space=vmem, size = 0x10000, scoped, tag = 'input window, operand 1, single buffered']
    #allocation6 [shape = 's32[1]{0}', space=sflag, size = 0x4, scoped, tag = 'scoped memory for tpu_custom_call.1']
    #allocation7 [shape = 'u8[32768]{0}', space=vmem, size = 0x8000, scoped, tag = 'input window, operand 3, single buffered']
    #allocation8 [shape = 'u8[4096]{0}', space=vmem, size = 0x1000, scoped, tag = 'output window, operand 0, single buffered']
    #allocation9 [shape = 'u8[4096]{0}', space=vmem, size = 0x1000, scoped, tag = 'output window, operand 1, single buffered']
    #allocation10 [shape = 's32[1]{0}', space=sflag, size = 0x4, scoped, tag = 'scoped memory for tpu_custom_call.1']
    %12 = vsyncpa [#allocation3], 0
    %13 = vsyncpa [#allocation6], 0
    %14 = vsyncpa [#allocation4], 0
    %15 = vsyncpa [#allocation10], 0
    // Predicated region
    $region2: #{tpu_custom_call.1} parent=1 // pred_check
      _
    $region3: #{tpu_custom_call.1} parent=1 // pred_check_branch
      %17 = sbr.rel (0) target = $region5
    $region4: #{tpu_custom_call.1} parent=1 // pred_region
      %s19 = ssub.s32 256, 256
      %20 = vsyncadd [#allocation3], %s19
      %s22 = sshll.u32 [#allocation2], 4
      %s23 = int_to_ptr.vmem [resolvable:$true] %s22
      %25 = dma.hbm_to_vmem [thread:$0]  %s0, 256, %s23, [#allocation3]
    $region5: #{tpu_custom_call.1} parent=1 // pred_fallthru
      _
    // Predicated region
    $region6: #{tpu_custom_call.1} parent=1 // pred_check
      _
    $region7: #{tpu_custom_call.1} parent=1 // pred_check_branch
      %27 = sbr.rel (0) target = $region9
    $region8: #{tpu_custom_call.1} parent=1 // pred_region
      %s29 = ssub.s32 2048, 2048
      %30 = vsyncadd [#allocation6], %s29
      %s31 = sshll.u32 [#allocation5], 4
      %s32 = int_to_ptr.vmem [resolvable:$true] %s31
      %37 = dma.hbm_to_vmem [thread:$0]  %s1, 2048, %s32, [#allocation6], 64, 64, 4
    $region9: #{tpu_custom_call.1} parent=1 // pred_fallthru
      _
    // Predicated region
    $region10: #{tpu_custom_call.1} parent=1 // pred_check
      _
    $region11: #{tpu_custom_call.1} parent=1 // pred_check_branch
      %39 = sbr.rel (0) target = $region13
    $region12: #{tpu_custom_call.1} parent=1 // pred_region
      _
    $region13: #{tpu_custom_call.1} parent=1 // pred_fallthru
      _
    // Predicated region
    $region14: #{tpu_custom_call.1} parent=1 // pred_check
      _
    $region15: #{tpu_custom_call.1} parent=1 // pred_check_branch
      %41 = sbr.rel (0) target = $region17
    $region16: #{tpu_custom_call.1} parent=1 // pred_region
      %s43 = ssub.s32 1024, 1024
      %44 = vsyncadd [#allocation6], %s43
      %s45 = sshll.u32 [#allocation7], 4
      %s46 = int_to_ptr.vmem [resolvable:$true] %s45
      %51 = dma.hbm_to_vmem [thread:$0]  %s3, 1024, %s46, [#allocation6], 64, 64, 4
    $region17: #{tpu_custom_call.1} parent=1 // pred_fallthru
      _
    // Predicated region
    $region18: #{tpu_custom_call.1} parent=1 // pred_check
      _
    $region19: #{tpu_custom_call.1} parent=1 // pred_check_branch
      %53 = sbr.rel (0) target = $region21
    $region20: #{tpu_custom_call.1} parent=1 // pred_region
      _
    $region21: #{tpu_custom_call.1} parent=1 // pred_fallthru
      _
    // Predicated region
    $region22: #{tpu_custom_call.1} parent=1 // pred_check
      _
    $region23: #{tpu_custom_call.1} parent=1 // pred_check_branch
      %55 = sbr.rel (0) target = $region25
    $region24: #{tpu_custom_call.1} parent=1 // pred_region
      %56 = dma.done [#allocation3], 256
    $region25: #{tpu_custom_call.1} parent=1 // pred_fallthru
      _
    // Predicated region
    $region26: #{tpu_custom_call.1} parent=1 // pred_check
      _
    $region27: #{tpu_custom_call.1} parent=1 // pred_check_branch
      %58 = sbr.rel (0) target = $region29
    $region28: #{tpu_custom_call.1} parent=1 // pred_region
      %59 = dma.done [#allocation6], 2048
    $region29: #{tpu_custom_call.1} parent=1 // pred_fallthru
      _
    // Predicated region
    $region30: #{tpu_custom_call.1} parent=1 // pred_check
      _
    $region31: #{tpu_custom_call.1} parent=1 // pred_check_branch
      %61 = sbr.rel (0) target = $region33
    $region32: #{tpu_custom_call.1} parent=1 // pred_region
      %62 = dma.done [#allocation6], 1024
    $region33: #{tpu_custom_call.1} parent=1 // pred_fallthru
      _
    %v64 = vld [vmem:[#allocation2] sm:$0xff]
    %v65 = vld [vmem:[#allocation2 + $0x8] sm:$0xff]
    %v66 = vpack.c.bf16 %v64, %v64
    %v67 = vpack.c.bf16 %v65, %v65
    %v68 = vld [vmem:[#allocation5] sm:$0xf]
    %v69 = vld [vmem:[#allocation5 + $0x4] sm:$0xf]
    %v70 = vld [vmem:[#allocation5 + $0x8] sm:$0xf]
    %v71 = vld [vmem:[#allocation5 + $0xc] sm:$0xf]
    %v72 = vld [vmem:[#allocation5 + $0x10] sm:$0xf]
    %v73 = vld [vmem:[#allocation5 + $0x14] sm:$0xf]
    %v74 = vld [vmem:[#allocation5 + $0x18] sm:$0xf]
    %v75 = vld [vmem:[#allocation5 + $0x1c] sm:$0xf]
    %v76 = vld [vmem:[#allocation5 + $0x20] sm:$0xf]
    %v77 = vld [vmem:[#allocation5 + $0x24] sm:$0xf]
    %v78 = vld [vmem:[#allocation5 + $0x28] sm:$0xf]
    %v79 = vld [vmem:[#allocation5 + $0x2c] sm:$0xf]
    %v80 = vld [vmem:[#allocation5 + $0x30] sm:$0xf]
    %v81 = vld [vmem:[#allocation5 + $0x34] sm:$0xf]
    %v82 = vld [vmem:[#allocation5 + $0x38] sm:$0xf]
    %v83 = vld [vmem:[#allocation5 + $0x3c] sm:$0xf]
    %v84 = vld [vmem:[#allocation5 + $0x40] sm:$0xf]
    %v85 = vld [vmem:[#allocation5 + $0x44] sm:$0xf]
    %v86 = vld [vmem:[#allocation5 + $0x48] sm:$0xf]
    %v87 = vld [vmem:[#allocation5 + $0x4c] sm:$0xf]
    %v88 = vld [vmem:[#allocation5 + $0x50] sm:$0xf]
    %v89 = vld [vmem:[#allocation5 + $0x54] sm:$0xf]
    %v90 = vld [vmem:[#allocation5 + $0x58] sm:$0xf]
    %v91 = vld [vmem:[#allocation5 + $0x5c] sm:$0xf]
    %v92 = vld [vmem:[#allocation5 + $0x60] sm:$0xf]
    %v93 = vld [vmem:[#allocation5 + $0x64] sm:$0xf]
    %v94 = vld [vmem:[#allocation5 + $0x68] sm:$0xf]
    %v95 = vld [vmem:[#allocation5 + $0x6c] sm:$0xf]
    %v96 = vld [vmem:[#allocation5 + $0x70] sm:$0xf]
    %v97 = vld [vmem:[#allocation5 + $0x74] sm:$0xf]
    %v98 = vld [vmem:[#allocation5 + $0x78] sm:$0xf]
    %v99 = vld [vmem:[#allocation5 + $0x7c] sm:$0xf]
    %v100 = vld [vmem:[%s2] sm:$0x1]
    %v102 = vlaneseq
    %v103 = vshrl.u32 %v102, 7
    %v104 = vsub.s32 0, %v103
    %v105 = vrot.slane %v100, %v104
    %v139 = vunpack.c.l.b16 %v68
    %v140 = vunpack.c.l.b16 %v69
    %v141 = vunpack.c.l.b16 %v70
    %v142 = vunpack.c.l.b16 %v71
    %v143 = vunpack.c.l.b16 %v72
    %v144 = vunpack.c.l.b16 %v73
    %v145 = vunpack.c.l.b16 %v74
    %v146 = vunpack.c.l.b16 %v75
    %v147 = vunpack.c.l.b16 %v76
    %v148 = vunpack.c.l.b16 %v77
    %v149 = vunpack.c.l.b16 %v78
    %v150 = vunpack.c.l.b16 %v79
    %v151 = vunpack.c.l.b16 %v80
    %v152 = vunpack.c.l.b16 %v81
    %v153 = vunpack.c.l.b16 %v82
    %v154 = vunpack.c.l.b16 %v83
    %v155 = vunpack.c.l.b16 %v84
    %v156 = vunpack.c.l.b16 %v85
    %v157 = vunpack.c.l.b16 %v86
    %v158 = vunpack.c.l.b16 %v87
    %v159 = vunpack.c.l.b16 %v88
    %v160 = vunpack.c.l.b16 %v89
    %v161 = vunpack.c.l.b16 %v90
    %v162 = vunpack.c.l.b16 %v91
    %v163 = vunpack.c.l.b16 %v92
    %v164 = vunpack.c.l.b16 %v93
    %v165 = vunpack.c.l.b16 %v94
    %v166 = vunpack.c.l.b16 %v95
    %v167 = vunpack.c.l.b16 %v96
    %v168 = vunpack.c.l.b16 %v97
    %v169 = vunpack.c.l.b16 %v98
    %v170 = vunpack.c.l.b16 %v99
    %v171 = vpack.c.b16 %v140, %v139
    %v172 = vpack.c.b16 %v142, %v141
    %v173 = vpack.c.b16 %v144, %v143
    %v174 = vpack.c.b16 %v146, %v145
    %v175 = vpack.c.b16 %v148, %v147
    %v176 = vpack.c.b16 %v150, %v149
    %v177 = vpack.c.b16 %v152, %v151
    %v178 = vpack.c.b16 %v154, %v153
    %v179 = vpack.c.b16 %v156, %v155
    %v180 = vpack.c.b16 %v158, %v157
    %v181 = vpack.c.b16 %v160, %v159
    %v182 = vpack.c.b16 %v162, %v161
    %v183 = vpack.c.b16 %v164, %v163
    %v184 = vpack.c.b16 %v166, %v165
    %v185 = vpack.c.b16 %v168, %v167
    %v186 = vpack.c.b16 %v170, %v169
    %203 = vmatprep.subr.bf16.mxu0 0
    %204 = vmatpush1.bf16.msra.mxu0 %v178
    %205 = vmatprep.subr.bf16.mxu0 0
    %206 = vmatpush1.bf16.msra.mxu0 %v177
    %207 = vmatprep.subr.bf16.mxu0 0
    %208 = vmatpush1.bf16.msra.mxu0 %v176
    %209 = vmatprep.subr.bf16.mxu0 0
    %210 = vmatpush1.bf16.msra.mxu0 %v175
    %211 = vmatprep.subr.bf16.mxu0 0
    %212 = vmatpush1.bf16.msra.mxu0 %v174
    %213 = vmatprep.subr.bf16.mxu0 0
    %214 = vmatpush1.bf16.msra.mxu0 %v173
    %215 = vmatprep.subr.bf16.mxu0 0
    %216 = vmatpush1.bf16.msra.mxu0 %v172
    %217 = vmatprep.subr.bf16.mxu0 0
    %218 = vmatpush1.bf16.msra.mxu0 %v171
    %219 = vmatprep.subr.bf16.mxu0 0
    %220 = vmatpush2.bf16.msra.mxu0 %v186
    %221 = vmatprep.subr.bf16.mxu0 0
    %222 = vmatpush2.bf16.msra.mxu0 %v185
    %223 = vmatprep.subr.bf16.mxu0 0
    %224 = vmatpush2.bf16.msra.mxu0 %v184
    %225 = vmatprep.subr.bf16.mxu0 0
    %226 = vmatpush2.bf16.msra.mxu0 %v183
    %227 = vmatprep.subr.bf16.mxu0 0
    %228 = vmatpush2.bf16.msra.mxu0 %v182
    %229 = vmatprep.subr.bf16.mxu0 0
    %230 = vmatpush2.bf16.msra.mxu0 %v181
    %231 = vmatprep.subr.bf16.mxu0 0
    %232 = vmatpush2.bf16.msra.mxu0 %v180
    %233 = vmatprep.subr.bf16.mxu0 0
    %234 = vmatpush2.bf16.msra.mxu0 %v179
    %235 = vmatprep.mubr.bf16.mxu0 %v67
    %236 = vmatmul.mubr.bf16.gmra.mxu0 %v66
    %v237 = vpop.f32.mrf.mxu0
    %v238 = vadd.f32 %v105, %v237
    %v239 = vpop.f32.mrf.mxu0
    %v240 = vpop.f32.mrf.mxu0
    %v241 = vpop.f32.mrf.mxu0
    %242 = vdwg.mxu0
    %v243 = vmax.f32 %v238, 0.0
    %244 = vst [vmem:[#allocation8] sm:$0xff] %v243
    %v245 = vpack.c.bf16 %v243, %v243
    %v246 = vld [vmem:[#allocation7] sm:$0xf]
    %v247 = vld [vmem:[#allocation7 + $0x4] sm:$0xf]
    %v248 = vld [vmem:[#allocation7 + $0x8] sm:$0xf]
    %v249 = vld [vmem:[#allocation7 + $0xc] sm:$0xf]
    %v250 = vld [vmem:[#allocation7 + $0x10] sm:$0xf]
    %v251 = vld [vmem:[#allocation7 + $0x14] sm:$0xf]
    %v252 = vld [vmem:[#allocation7 + $0x18] sm:$0xf]
    %v253 = vld [vmem:[#allocation7 + $0x1c] sm:$0xf]
    %v254 = vld [vmem:[#allocation7 + $0x20] sm:$0xf]
    %v255 = vld [vmem:[#allocation7 + $0x24] sm:$0xf]
    %v256 = vld [vmem:[#allocation7 + $0x28] sm:$0xf]
    %v257 = vld [vmem:[#allocation7 + $0x2c] sm:$0xf]
    %v258 = vld [vmem:[#allocation7 + $0x30] sm:$0xf]
    %v259 = vld [vmem:[#allocation7 + $0x34] sm:$0xf]
    %v260 = vld [vmem:[#allocation7 + $0x38] sm:$0xf]
    %v261 = vld [vmem:[#allocation7 + $0x3c] sm:$0xf]
    %v262 = vld [vmem:[%s4] sm:$0x1]
    %v264 = vlaneseq
    %v265 = vshrl.u32 %v264, 7
    %v266 = vsub.s32 0, %v265
    %v267 = vrot.slane %v262, %v266
    %v285 = vunpack.c.l.b16 %v246
    %v286 = vunpack.c.l.b16 %v247
    %v287 = vunpack.c.l.b16 %v248
    %v288 = vunpack.c.l.b16 %v249
    %v289 = vunpack.c.l.b16 %v250
    %v290 = vunpack.c.l.b16 %v251
    %v291 = vunpack.c.l.b16 %v252
    %v292 = vunpack.c.l.b16 %v253
    %v293 = vunpack.c.l.b16 %v254
    %v294 = vunpack.c.l.b16 %v255
    %v295 = vunpack.c.l.b16 %v256
    %v296 = vunpack.c.l.b16 %v257
    %v297 = vunpack.c.l.b16 %v258
    %v298 = vunpack.c.l.b16 %v259
    %v299 = vunpack.c.l.b16 %v260
    %v300 = vunpack.c.l.b16 %v261
    %v301 = vpack.c.b16 %v286, %v285
    %v302 = vpack.c.b16 %v288, %v287
    %v303 = vpack.c.b16 %v290, %v289
    %v304 = vpack.c.b16 %v292, %v291
    %v305 = vpack.c.b16 %v294, %v293
    %v306 = vpack.c.b16 %v296, %v295
    %v307 = vpack.c.b16 %v298, %v297
    %v308 = vpack.c.b16 %v300, %v299
    %317 = vmatprep.subr.bf16.mxu0 0
    %318 = vmatpush1.bf16.msra.mxu0 %v308
    %319 = vmatprep.subr.bf16.mxu0 0
    %320 = vmatpush1.bf16.msra.mxu0 %v307
    %321 = vmatprep.subr.bf16.mxu0 0
    %322 = vmatpush1.bf16.msra.mxu0 %v306
    %323 = vmatprep.subr.bf16.mxu0 0
    %324 = vmatpush1.bf16.msra.mxu0 %v305
    %325 = vmatprep.subr.bf16.mxu0 0
    %326 = vmatpush1.bf16.msra.mxu0 %v304
    %327 = vmatprep.subr.bf16.mxu0 0
    %328 = vmatpush1.bf16.msra.mxu0 %v303
    %329 = vmatprep.subr.bf16.mxu0 0
    %330 = vmatpush1.bf16.msra.mxu0 %v302
    %331 = vmatprep.subr.bf16.mxu0 0
    %332 = vmatpush1.bf16.msra.mxu0 %v301
    %333 = vmatprep.subr.bf16.mxu0 0
    %334 = vmatpush2.bf16.msra.mxu0 0
    %335 = vmatprep.subr.bf16.mxu0 0
    %336 = vmatpush2.bf16.msra.mxu0 0
    %337 = vmatprep.subr.bf16.mxu0 0
    %338 = vmatpush2.bf16.msra.mxu0 0
    %339 = vmatprep.subr.bf16.mxu0 0
    %340 = vmatpush2.bf16.msra.mxu0 0
    %341 = vmatprep.subr.bf16.mxu0 0
    %342 = vmatpush2.bf16.msra.mxu0 0
    %343 = vmatprep.subr.bf16.mxu0 0
    %344 = vmatpush2.bf16.msra.mxu0 0
    %345 = vmatprep.subr.bf16.mxu0 0
    %346 = vmatpush2.bf16.msra.mxu0 0
    %347 = vmatprep.subr.bf16.mxu0 0
    %348 = vmatpush2.bf16.msra.mxu0 0
    %349 = vmatprep.mubr.bf16.mxu0 0
    %350 = vmatmul.mubr.bf16.gmra.mxu0 %v245
    %v351 = vpop.f32.mrf.mxu0
    %v352 = vadd.f32 %v267, %v351
    %v353 = vpop.f32.mrf.mxu0
    %v354 = vpop.f32.mrf.mxu0
    %v355 = vpop.f32.mrf.mxu0
    %356 = vdwg.mxu0
    %v357 = vmul.f32 %v352, %v352
    %358 = vadd.xlane.f32.xlu0 %v357
    %v359 = vpop.xlane.xlu0 %358
    %v360 = vmax.f32 %v359, 1e-24
    %v361 = vrsqrt.pop %v360
    %v362 = vmul.f32 %v352, %v361
    %363 = vst [vmem:[#allocation9] sm:$0xff] %v362
    // Predicated region
    $region34: #{tpu_custom_call.1} parent=1 // pred_check
      _
    $region35: #{tpu_custom_call.1} parent=1 // pred_check_branch
      %365 = sbr.rel (0) target = $region37
    $region36: #{tpu_custom_call.1} parent=1 // pred_region
      %s367 = ssub.s32 128, 128
      %368 = vsyncadd [#allocation4], %s367
      %s370 = sshll.u32 [#allocation8], 4
      %s371 = int_to_ptr.vmem [resolvable:$true] %s370
      %373 = dma.vmem_to_hbm [thread:$0]  %s371, 128, %s5, [#allocation4]
    $region37: #{tpu_custom_call.1} parent=1 // pred_fallthru
      _
    // Predicated region
    $region38: #{tpu_custom_call.1} parent=1 // pred_check
      _
    $region39: #{tpu_custom_call.1} parent=1 // pred_check_branch
      %375 = sbr.rel (0) target = $region41
    $region40: #{tpu_custom_call.1} parent=1 // pred_region
      %s377 = ssub.s32 128, 128
      %378 = vsyncadd [#allocation10], %s377
      %s380 = sshll.u32 [#allocation9], 4
      %s381 = int_to_ptr.vmem [resolvable:$true] %s380
      %383 = dma.vmem_to_hbm [thread:$0]  %s381, 128, %s6, [#allocation10]
    $region41: #{tpu_custom_call.1} parent=1 // pred_fallthru
      _
    // Predicated region
    $region42: #{tpu_custom_call.1} parent=1 // pred_check
      _
    $region43: #{tpu_custom_call.1} parent=1 // pred_check_branch
      %385 = sbr.rel (0) target = $region45
    $region44: #{tpu_custom_call.1} parent=1 // pred_region
      %386 = dma.done [#allocation4], 128
    $region45: #{tpu_custom_call.1} parent=1 // pred_fallthru
      _
    // Predicated region
    $region46: #{tpu_custom_call.1} parent=1 // pred_check
      _
    $region47: #{tpu_custom_call.1} parent=1 // pred_check_branch
      %388 = sbr.rel (0) target = $region49
    $region48: #{tpu_custom_call.1} parent=1 // pred_region
      %389 = dma.done [#allocation10], 128
    $region49: #{tpu_custom_call.1} parent=1 // pred_fallthru
      _
    %390 = vsyncpa [#allocation3], 1
    %391 = vsyncpa [#allocation6], 1
    %392 = vsyncpa [#allocation4], 1
    %393 = vsyncpa [#allocation10], 1

</llo_original>
